<compile_context>
chip_gen: v5e
topology: v5e:2x2
jax: 0.10.0
libtpu: 0.0.40
codegen_flags: <defaults>
</compile_context>

<pallas_src>
import math

import jax
import jax.numpy as jnp
from jax import lax
from jax.experimental import pallas as pl
from jax.experimental.pallas import tpu as pltpu


def _round_up(x: int, m: int) -> int:
    return ((x + m - 1) // m) * m


def _embed_kernel(idx_ref, w_ref, out_ref):
    # idx_ref: (TILE_N, 1) int32
    # w_ref:   (c_in_pad, d_model_pad) f32   (resident, single-buffered)
    # out_ref: (TILE_N, d_model_pad) f32
    idx = idx_ref[...]                                   # (TILE_N, 1)
    tile_n = idx.shape[0]
    c_in_pad = w_ref.shape[0]
    col = lax.broadcasted_iota(jnp.int32, (tile_n, c_in_pad), 1)
    onehot = (col == idx).astype(w_ref.dtype)            # exact f32 select
    out_ref[...] = jnp.dot(
        onehot, w_ref[...], preferred_element_type=jnp.float32
    ).astype(out_ref.dtype)


def make_fixed_embedding_table(c_in: int, d_model: int) -> jnp.ndarray:
    """Deterministic sinusoidal table identical to the PyTorch __init__."""
    assert d_model % 2 == 0, "FixedEmbedding reference assumes even d_model"
    position = jnp.arange(c_in, dtype=jnp.float32)[:, None]          # (c_in, 1)
    div_term = jnp.exp(
        jnp.arange(0, d_model, 2, dtype=jnp.float32)
        * -(math.log(10000.0) / d_model)
    )                                                                # (d/2,)
    angles = position * div_term                                     # (c_in, d/2)
    w = jnp.zeros((c_in, d_model), dtype=jnp.float32)
    w = w.at[:, 0::2].set(jnp.sin(angles))
    w = w.at[:, 1::2].set(jnp.cos(angles))
    return w


def fixed_embedding(x: jnp.ndarray, w: jnp.ndarray, *, tile_n_max: int = 2048
                    ) -> jnp.ndarray:
    """x: (B, L) int indices -> (B, L, d_model) f32 embeddings."""
    c_in, d_model = w.shape
    b, l = x.shape
    n = b * l

    # Padded geometry: lane-dense output columns, clean MXU K dim.
    d_model_pad = _round_up(d_model, 128)
    c_in_pad = _round_up(c_in, 128)

    # Token tile: as large as tile_n_max allows, balanced against n so the
    # padded tail is < 1 tile, and >= 2 grid steps when possible so the
    # "parallel" axis can shard across both TensorCores on v7x.
    num_tiles = pl.cdiv(n, tile_n_max)
    if n >= 16:
        num_tiles = max(num_tiles, 2)
    tile_n = _round_up(pl.cdiv(n, num_tiles), 8)
    n_pad = _round_up(n, tile_n)
    grid = (n_pad // tile_n,)

    idx = x.reshape(n).astype(jnp.int32)
    idx = jnp.pad(idx, (0, n_pad - n))             # pad with in-range index 0
    idx2d = idx.reshape(n_pad, 1)
    w_pad = jnp.pad(w, ((0, c_in_pad - c_in), (0, d_model_pad - d_model)))

    # Advisory cost: bandwidth-dominated (output write + one table read).
    cost = pl.CostEstimate(
        flops=2 * n_pad * c_in_pad * d_model_pad,
        transcendentals=0,
        bytes_accessed=(n_pad * d_model_pad * 4
                        + c_in_pad * d_model_pad * 4
                        + n_pad * 4),
    )

    # VMEM budget: resident (single-buffered) table + double-buffered output
    # tile + double-buffered idx tile (lane-padded) + one-hot intermediate.
    vmem_need = (
        c_in_pad * d_model_pad * 4
        + 2 * tile_n * d_model_pad * 4
        + 2 * tile_n * 128 * 4
        + tile_n * c_in_pad * 4
    )
    vmem_limit = int(min(2 * vmem_need + (4 << 20), 48 << 20))

    out = pl.pallas_call(
        _embed_kernel,
        out_shape=jax.ShapeDtypeStruct((n_pad, d_model_pad), jnp.float32),
        grid=grid,
        in_specs=[
            pl.BlockSpec((tile_n, 1), lambda i: (i, 0)),
            pl.BlockSpec((c_in_pad, d_model_pad), lambda i: (0, 0),
                         pipeline_mode=pl.Buffered(1)),
        ],
        out_specs=pl.BlockSpec((tile_n, d_model_pad), lambda i: (i, 0)),
        compiler_params=pltpu.CompilerParams(
            dimension_semantics=("parallel",),
            vmem_limit_bytes=vmem_limit,
        ),
        cost_estimate=cost,
    )(idx2d, w_pad)

    return out[:n, :d_model].reshape(b, l, d_model)


if __name__ == "__main__":
    c_in, d_model = 32, 128
    batch, seq = 2, 8

    w = make_fixed_embedding_table(c_in, d_model)

    key = jax.random.PRNGKey(0)
    x = jax.random.randint(key, (batch, seq), 0, c_in, dtype=jnp.int32)

    out = fixed_embedding(x, w)
    out = jax.block_until_ready(out)

    # Reference check: plain table lookup (what nn.Embedding does).
    ref = w[x]
    assert out.shape == (batch, seq, d_model)
    assert jnp.allclose(out, ref, atol=1e-6), "mismatch vs reference gather"

    print("KERNEL_OK")
</pallas_src>

<mosaic_0001>
module attributes {stable_mosaic.version = 11 : i64} {
  func.func @_embed_kernel(%arg0: i32, %arg1: memref<8x1xi32, #tpu.memory_space<vmem>>, %arg2: memref<128x128xf32, #tpu.memory_space<vmem>>, %arg3: memref<8x128xf32, #tpu.memory_space<vmem>>) attributes {dimension_semantics = [#tpu.dimension_semantics<parallel>], iteration_bounds = array<i64: 2>, scalar_prefetch = 0 : i64, scratch_operands = 0 : i64, tpu.core_type = #tpu.core_type<tc>, window_params = [{transform_indices = @transform_0, window_bounds = array<i64: 8, 1>}, {pipeline_mode = #tpu.pipeline_mode<synchronous>, transform_indices = @transform_1, window_bounds = array<i64: 128, 128>}, {transform_indices = @transform_2, window_bounds = array<i64: 8, 128>}]} {
    %c0 = arith.constant 0 : index
    %c0_0 = arith.constant 0 : index
    %0 = vector.load %arg1[%c0, %c0_0] : memref<8x1xi32, #tpu.memory_space<vmem>>, vector<8x1xi32>
    %1 = tpu.iota {dimensions = array<i32: 1>} : vector<8x128xi32>
    %2 = vector.broadcast %0 : vector<8x1xi32> to vector<8x128xi32>
    %3 = arith.cmpi eq, %1, %2 : vector<8x128xi32>
    %4 = arith.extui %3 : vector<8x128xi1> to vector<8x128xi32>
    %5 = arith.sitofp %4 : vector<8x128xi32> to vector<8x128xf32>
    %c0_1 = arith.constant 0 : index
    %c0_2 = arith.constant 0 : index
    %6 = vector.load %arg2[%c0_1, %c0_2] : memref<128x128xf32, #tpu.memory_space<vmem>>, vector<128x128xf32>
    %cst = arith.constant dense<0.000000e+00> : vector<8x128xf32>
    %7 = tpu.matmul %5, %6, %cst {dimension_numbers = #tpu.dot_dimension_numbers<[1], [0], [0], [1], [0, 0, 1, 1], [], []>} : vector<8x128xf32>, vector<128x128xf32>, vector<8x128xf32> -> vector<8x128xf32>
    %c0_3 = arith.constant 0 : index
    %c0_4 = arith.constant 0 : index
    %8 = vector.load %arg3[%c0_3, %c0_4] : memref<8x128xf32, #tpu.memory_space<vmem>>, vector<8x128xf32>
    tpu.vector_store %arg3[%c0_3, %c0_4], %7 {strides = array<i32>} : memref<8x128xf32, #tpu.memory_space<vmem>>, vector<8x128xf32>,
    return
  }
  func.func @transform_0(%arg0: i32) -> (i32, i32) {
    %c0_i32 = arith.constant 0 : i32
    %c0_i32_0 = arith.constant 0 : i32
    return %arg0, %c0_i32 : i32, i32
  }
  func.func @transform_1(%arg0: i32) -> (i32, i32) {
    %c0_i32 = arith.constant 0 : i32
    %c0_i32_0 = arith.constant 0 : i32
    %c0_i32_1 = arith.constant 0 : i32
    return %c0_i32, %c0_i32_0 : i32, i32
  }
  func.func @transform_2(%arg0: i32) -> (i32, i32) {
    %c0_i32 = arith.constant 0 : i32
    %c0_i32_0 = arith.constant 0 : i32
    return %arg0, %c0_i32 : i32, i32
  }
}

</mosaic_0001>

<llo_original>
// kernel: tpu_custom_call.1
$region0: #{tpu_custom_call.1}
  #allocation0 [shape = 'u32[]', space=smem, size = 0x4, offset = 0x4, fixed_abs, tag = 'smem constant byte address 0x4 - core index']
  #allocation1 [shape = 'u32[72,128]{1,0:T(1,128)}', space=vmem, size = 0x9000, scoped, tag = 'internal scratch']
  %s0 = inlined_call_operand.vmem [shape: s32[16,1], index: 0, kind: input, shape index: {}]
  %s1 = inlined_call_operand.hbm [shape: f32[128,128], index: 1, kind: input, shape index: {}]
  %s2 = inlined_call_operand.hbm [shape: f32[16,128], index: 2, kind: output, shape index: {}]
  %s3 = sld [smem:[#allocation0]]
  $region45: #{tpu_custom_call.1} parent=0
    _
  %s5 = ssub.s32 1, %s3
  %s6 = scalar_select 0, %s5, %s3
  $region1: #{tpu_custom_call.1} parent=0
    #allocation2 [shape = 'u8[65536]{0}', space=vmem, size = 0x10000, scoped, tag = 'input window, operand 1, single buffered']
    #allocation3 [shape = 's32[2]{0}', space=sflag, size = 0x8, scoped, tag = 'scoped memory for tpu_custom_call.1']
    #allocation4 [shape = 's32[2]{0}', space=sflag, size = 0x8, scoped, tag = 'scoped memory for tpu_custom_call.1']
    #allocation5 [shape = 'u8[8192]{0}', space=vmem, size = 0x2000, scoped, tag = 'output window, operand 0']
    %7 = vsyncpa [#allocation3], 0
    %8 = vsyncpa [#allocation4], 0
    %s9 = scalar_lea.sflag [#allocation4], 1
    %10 = vsyncpa %s9, 0
    loop: start=0, step=1, limit=4
    $region2: #{tpu_custom_call.1} parent=1 // loop_pre_header
      _
    $region3: #{tpu_custom_call.1} parent=1 // loop_header
      %s12 = sphi 0, %s16
      %p13 = scmp.ge.s32.totalorder %s12, 4
      %s22 = sphi 0, %s24
      %s25 = sphi 0, %s22
      %s26 = sphi 0, %s25
      %s42 = sphi 0, %s26
      %s46 = sphi 0, %s46
      %s48 = sphi 0, %s46
      %s49 = sphi 0, %s48
      %s63 = sphi 0, %s49
      %s69 = sphi 0, %s71
      %s72 = sphi 0, %s69
      %s73 = sphi 0, %s72
      %s89 = sphi 0, %s73
    $region4: #{tpu_custom_call.1} parent=1 // loop_header_branch
      %15 = sbr.rel (%p13) target = $region8
    $region5: #{tpu_custom_call.1} parent=1 // loop_body
      %s17 = ssub.s32 %s12, 1
      %s18 = ssub.s32 %s12, 2
      %s19 = sadd.s32 %s12, 1
      %s20 = ssub.s32 %s12, %s19
      %p21 = scmp.eq.s32.totalorder %s20, 0
      %s23 = sadd.s32 %s22, 1
      %s24 = scalar_select %p21, %s22, %s23
      %p27 = pneg %p21
      %p28 = scmp.eq.s32.totalorder %s12, 1
      %p29 = por %p27, %p28
      %p30 = scmp.ne.s32.totalorder %s22, %s25
      %p31 = scmp.eq.s32.totalorder %s12, 0
      %p32 = por %p30, %p31
      %p33 = scmp.ne.s32.totalorder %s22, %s25
      %p34 = scmp.eq.s32.totalorder %s17, 1
      %p35 = por %p33, %p34
      %p36 = scmp.ne.s32.totalorder %s25, %s26
      %p37 = scmp.eq.s32.totalorder %s17, 0
      %p38 = por %p36, %p37
      %p39 = scmp.ne.s32.totalorder %s25, %s26
      %p40 = scmp.eq.s32.totalorder %s18, 1
      %p41 = por %p39, %p40
      %p43 = scmp.ne.s32.totalorder %s26, %s42
      %p44 = scmp.eq.s32.totalorder %s18, 0
      %p45 = por %p43, %p44
      %s47 = sadd.s32 %s46, 1
      %p50 = scmp.eq.s32.totalorder %s12, 1
      %p51 = scmp.ne.s32.totalorder %s46, %s48
      %p52 = scmp.eq.s32.totalorder %s12, 0
      %p53 = por %p51, %p52
      %p54 = scmp.ne.s32.totalorder %s46, %s48
      %p55 = scmp.eq.s32.totalorder %s17, 1
      %p56 = por %p54, %p55
      %p57 = scmp.ne.s32.totalorder %s48, %s49
      %p58 = scmp.eq.s32.totalorder %s17, 0
      %p59 = por %p57, %p58
      %p60 = scmp.ne.s32.totalorder %s48, %s49
      %p61 = scmp.eq.s32.totalorder %s18, 1
      %p62 = por %p60, %p61
      %p64 = scmp.ne.s32.totalorder %s49, %s63
      %p65 = scmp.eq.s32.totalorder %s18, 0
      %p66 = por %p64, %p65
      %s67 = ssub.s32 %s12, %s19
      %p68 = scmp.eq.s32.totalorder %s67, 0
      %s70 = sadd.s32 %s69, 1
      %s71 = scalar_select %p68, %s69, %s70
      %p74 = pneg %p68
      %p75 = scmp.eq.s32.totalorder %s12, 1
      %p76 = por %p74, %p75
      %p77 = scmp.ne.s32.totalorder %s69, %s72
      %p78 = scmp.eq.s32.totalorder %s12, 0
      %p79 = por %p77, %p78
      %p80 = scmp.ne.s32.totalorder %s69, %s72
      %p81 = scmp.eq.s32.totalorder %s17, 1
      %p82 = por %p80, %p81
      %p83 = scmp.ne.s32.totalorder %s72, %s73
      %p84 = scmp.eq.s32.totalorder %s17, 0
      %p85 = por %p83, %p84
      %p86 = scmp.ne.s32.totalorder %s72, %s73
      %p87 = scmp.eq.s32.totalorder %s18, 1
      %p88 = por %p86, %p87
      %p90 = scmp.ne.s32.totalorder %s73, %s89
      %p91 = scmp.eq.s32.totalorder %s18, 0
      %p92 = por %p90, %p91
      %p93 = scmp.le.s32.totalorder 1, %s12
      %p94 = scmp.lt.s32.totalorder %s12, 3
      %p95 = pnand %p93, %p94
      %p96 = pneg %p95
      // Predicated region
      $region9: #{tpu_custom_call.1} parent=5 // pred_check
        _
      $region10: #{tpu_custom_call.1} parent=5 // pred_check_branch
        %98 = sbr.rel (%p95) target = $region12
      $region11: #{tpu_custom_call.1} parent=5 // pred_region
        %s99 = ssub.s32 %s12, 1
        // Predicated region
        $region13: #{tpu_custom_call.1} parent=11 // pred_check
          %p100 = pneg %p59
        $region14: #{tpu_custom_call.1} parent=11 // pred_check_branch
          %102 = sbr.rel (%p100) target = $region16
        $region15: #{tpu_custom_call.1} parent=11 // pred_region
          %104 = vsyncadd [#allocation3], 0
          %s105 = sshll.u32 %s1, 4
          %s106 = int_to_ptr.hbm [resolvable:$true] %s105
          %s107 = sshll.u32 [#allocation2], 4
          %s108 = int_to_ptr.vmem [resolvable:$true] %s107
          %113 = dma.hbm_to_vmem [thread:$0]  %s106, 2048, %s108, [#allocation3], 128, 128, 8
        $region16: #{tpu_custom_call.1} parent=11 // pred_fallthru
          _
      $region12: #{tpu_custom_call.1} parent=5 // pred_fallthru
        _
      %p114 = scmp.lt.s32.totalorder %s12, 2
      // Predicated region
      $region17: #{tpu_custom_call.1} parent=5 // pred_check
        %p115 = pneg %p114
      $region18: #{tpu_custom_call.1} parent=5 // pred_check_branch
        %117 = sbr.rel (%p115) target = $region20
      $region19: #{tpu_custom_call.1} parent=5 // pred_region
        // Predicated region
        $region21: #{tpu_custom_call.1} parent=19 // pred_check
          %p118 = pneg %p32
        $region22: #{tpu_custom_call.1} parent=19 // pred_check_branch
          %120 = sbr.rel (%p118) target = $region24
        $region23: #{tpu_custom_call.1} parent=19 // pred_region
          %p121 = scmp.lt.s32.totalorder %s12, 1
          %s122 = scalar_select %p121, %s12, 1
          %s123 = smul.addr %s122, 8
          %s124 = scalar_lea.vmem %s0, %s123
        $region24: #{tpu_custom_call.1} parent=19 // pred_fallthru
          _
      $region20: #{tpu_custom_call.1} parent=5 // pred_fallthru
        _
      %p125 = scmp.le.s32.totalorder 1, %s12
      %p126 = scmp.lt.s32.totalorder %s12, 3
      %p127 = pnand %p125, %p126
      %p128 = pneg %p127
      // Predicated region
      $region25: #{tpu_custom_call.1} parent=5 // pred_check
        _
      $region26: #{tpu_custom_call.1} parent=5 // pred_check_branch
        %130 = sbr.rel (%p127) target = $region28
      $region27: #{tpu_custom_call.1} parent=5 // pred_region
        %s131 = ssub.s32 %s12, 1
        // Predicated region
        $region29: #{tpu_custom_call.1} parent=27 // pred_check
          %p132 = pneg %p59
        $region30: #{tpu_custom_call.1} parent=27 // pred_check_branch
          %134 = sbr.rel (%p132) target = $region32
        $region31: #{tpu_custom_call.1} parent=27 // pred_region
          %136 = dma.done [#allocation3], 2048
        $region32: #{tpu_custom_call.1} parent=27 // pred_fallthru
          _
        %p137 = scmp.lt.s32.totalorder %s17, 1
        %s138 = scalar_select %p137, %s17, 1
        %s139 = smul.addr %s138, 8
        %s140 = scalar_lea.vmem %s0, %s139
        %p141 = pneg %p38
        %p142 = pneg %p35
        %p143 = pneg %p59
        %p144 = pneg %p56
        %p145 = pneg %p85
        %p146 = pneg %p82
        %s147 = sand.u32 %s72, 1
        %s148 = scalar_lea.sflag [#allocation4], %s147
        %s149 = sand.u32 %s72, 1
        %s150 = smul.addr %s149, 8
        %s151 = scalar_lea.vmem [#allocation5], %s150
        %p152 = scmp.lt.s32.totalorder %s17, 1
        %s153 = scalar_select %p152, %s17, 1
        %s154 = smul.addr %s153, 8
        %s155 = scalar_lea.vmem %s0, %s154
        %v156 = vld [vmem:[%s155] sm:$0xff]
        %v157 = vlaneseq
        %v158 = vand.u32 %v157, 127
        %159 = vset.pattern.permute.xlu0 0
        %160 = vperm.xlu0 %159, %v156
        %v161 = vpop.permute.xlu0 %160
        %vm162 = vcmp.eq.s32.totalorder %v158, %v161
        %v163 = vsel %vm162, 1, 0
        %v164 = vcvt.s32.f32 %v163
        %v165 = vld [vmem:[#allocation2] sm:$0xff]
        %v166 = vld [vmem:[#allocation2 + $0x8] sm:$0xff]
        %v167 = vld [vmem:[#allocation2 + $0x10] sm:$0xff]
        %v168 = vld [vmem:[#allocation2 + $0x18] sm:$0xff]
        %v169 = vld [vmem:[#allocation2 + $0x20] sm:$0xff]
        %v170 = vld [vmem:[#allocation2 + $0x28] sm:$0xff]
        %v171 = vld [vmem:[#allocation2 + $0x30] sm:$0xff]
        %v172 = vld [vmem:[#allocation2 + $0x38] sm:$0xff]
        %v173 = vld [vmem:[#allocation2 + $0x40] sm:$0xff]
        %v174 = vld [vmem:[#allocation2 + $0x48] sm:$0xff]
        %v175 = vld [vmem:[#allocation2 + $0x50] sm:$0xff]
        %v176 = vld [vmem:[#allocation2 + $0x58] sm:$0xff]
        %v177 = vld [vmem:[#allocation2 + $0x60] sm:$0xff]
        %v178 = vld [vmem:[#allocation2 + $0x68] sm:$0xff]
        %v179 = vld [vmem:[#allocation2 + $0x70] sm:$0xff]
        %v180 = vld [vmem:[#allocation2 + $0x78] sm:$0xff]
        %181 = vmatpush.msra.mxu0 %v180
        %182 = vmatpush.msra.mxu0 %v179
        %183 = vmatpush.msra.mxu0 %v178
        %184 = vmatpush.msra.mxu0 %v177
        %185 = vmatpush.msra.mxu0 %v176
        %186 = vmatpush.msra.mxu0 %v175
        %187 = vmatpush.msra.mxu0 %v174
        %188 = vmatpush.msra.mxu0 %v173
        %189 = vmatpush.msra.mxu0 %v172
        %190 = vmatpush.msra.mxu0 %v171
        %191 = vmatpush.msra.mxu0 %v170
        %192 = vmatpush.msra.mxu0 %v169
        %193 = vmatpush.msra.mxu0 %v168
        %194 = vmatpush.msra.mxu0 %v167
        %195 = vmatpush.msra.mxu0 %v166
        %196 = vmatpush.msra.mxu0 %v165
        %197 = vmatmul.f32.gmra.mxu0 %v164
        %v198 = vpop.f32.mrf.mxu0
        %v199 = vadd.f32 0.0, %v198
        %200 = vdwg.mxu0
        %201 = vst [vmem:[%s151] sm:$0xff] %v199
        %s202 = sand.u32 %s72, 1
        %s203 = scalar_lea.sflag [#allocation4], %s202
        %s204 = sand.u32 %s72, 1
        %s205 = smul.addr %s204, 8
        %s206 = scalar_lea.vmem [#allocation5], %s205
        // Predicated region
        $region33: #{tpu_custom_call.1} parent=27 // pred_check
          %p207 = pneg %p82
        $region34: #{tpu_custom_call.1} parent=27 // pred_check_branch
          %209 = sbr.rel (%p207) target = $region36
        $region35: #{tpu_custom_call.1} parent=27 // pred_region
          %211 = vsyncadd %s203, 0
          %s212 = smul.addr %s17, 8
          %s213 = scalar_lea.hbm %s2, %s212
          %s215 = sshll.u32 %s206, 4
          %s216 = int_to_ptr.vmem [resolvable:$true] %s215
          %s217 = sshll.u32 %s213, 4
          %s218 = int_to_ptr.hbm [resolvable:$true] %s217
          %220 = dma.vmem_to_hbm [thread:$0]  %s216, 128, %s218, %s203
        $region36: #{tpu_custom_call.1} parent=27 // pred_fallthru
          _
      $region28: #{tpu_custom_call.1} parent=5 // pred_fallthru
        _
      %p221 = scmp.le.s32.totalorder 2, %s12
      // Predicated region
      $region37: #{tpu_custom_call.1} parent=5 // pred_check
        %p222 = pneg %p221
      $region38: #{tpu_custom_call.1} parent=5 // pred_check_branch
        %224 = sbr.rel (%p222) target = $region40
      $region39: #{tpu_custom_call.1} parent=5 // pred_region
        %s225 = ssub.s32 %s12, 2
        // Predicated region
        $region41: #{tpu_custom_call.1} parent=39 // pred_check
          %p226 = pneg %p88
        $region42: #{tpu_custom_call.1} parent=39 // pred_check_branch
          %228 = sbr.rel (%p226) target = $region44
        $region43: #{tpu_custom_call.1} parent=39 // pred_region
          %s229 = sand.u32 %s73, 1
          %s230 = scalar_lea.sflag [#allocation4], %s229
          %s231 = sand.u32 %s73, 1
          %s232 = smul.addr %s231, 8
          %s233 = scalar_lea.vmem [#allocation5], %s232
          %235 = dma.done %s230, 128
        $region44: #{tpu_custom_call.1} parent=39 // pred_fallthru
          _
      $region40: #{tpu_custom_call.1} parent=5 // pred_fallthru
        _
    $region6: #{tpu_custom_call.1} parent=1 // loop_footer
      %s16 = sadd.s32 1, %s12
    $region7: #{tpu_custom_call.1} parent=1 // loop_footer_branch
      %11 = sbr.rel target = $region3
    $region8: #{tpu_custom_call.1} parent=1 // loop_exit
      _
    %236 = vsyncpa [#allocation3], 1
    %s237 = scalar_lea.sflag [#allocation3], 1
    %238 = vsyncpa %s237, 1
    %239 = vsyncpa [#allocation4], 1
    %s240 = scalar_lea.sflag [#allocation4], 1
    %241 = vsyncpa %s240, 1

</llo_original>
